<compile_context>
chip_gen: v5e
topology: v5e:2x2
jax: 0.10.0
libtpu: 0.0.40
codegen_flags: <defaults>
</compile_context>

<pallas_src>
import functools

import jax
import jax.numpy as jnp
from jax.experimental import pallas as pl
from jax.experimental.pallas import tpu as pltpu


def _gat_kernel(feat_edge_ref, feat_edge_a_ref, feat_node_a_ref,
                weight_ref, att1_ref, att2_ref, *rest,
                alpha, sup, concat):
    if sup:
        adj_ref, out_ref = rest
    else:
        (out_ref,) = rest
        adj_ref = None

    # Wh = feat_node_a @ weight                                   (N_a, F_out)
    # bf16 operands, f32 MXU accumulation.
    wh = jnp.dot(feat_node_a_ref[...].astype(jnp.bfloat16),
                 weight_ref[...].astype(jnp.bfloat16),
                 preferred_element_type=jnp.float32)

    # Afeat_edge   = feat_edge   @ att[:E]   -> (TM, 1)   (lane reduction)
    a1 = jnp.sum(feat_edge_ref[...] * att1_ref[...], axis=1, keepdims=True)

    # Afeat_edge_a.T = att[E:].T @ feat_edge_a.T -> (1, N_a) directly
    # (avoids a sublane->lane transpose of the (N_a, 1) column).
    a2t = jax.lax.dot_general(att2_ref[...], feat_edge_a_ref[...],
                              (((1,), (1,)), ((), ())),
                              preferred_element_type=jnp.float32)

    # e = leaky_relu(Afeat_edge + Afeat_edge_a.T, alpha)          (TM, N_a)
    e = a1 + a2t
    e = jnp.where(e > 0, e, alpha * e)

    if sup:
        # attention = where(adj > 0, e, -9e15) -- scalar fill, no full_like.
        e = jnp.where(adj_ref[...] > 0, e, -9000000000000000.0)

    # Row softmax, with the normalization deferred past the second matmul.
    m = jnp.max(e, axis=1, keepdims=True)
    p = jnp.exp(e - m)                                  # un-normalized probs
    denom = jnp.sum(p, axis=1, keepdims=True)           # (TM, 1)

    # TODO(synk): F.dropout(attention, p, training=self.training) — identity
    # here (inference / eval-mode semantics).

    # h_prime = (p @ Wh) * (1 / denom)                            (TM, F_out)
    h = jnp.dot(p.astype(jnp.bfloat16), wh.astype(jnp.bfloat16),
                preferred_element_type=jnp.float32)
    h = h * pl.reciprocal(denom, approx=True)

    if concat:
        # ELU. (jnp.expm1 would be marginally more accurate near 0; exp-1 is
        # kept for guaranteed Mosaic lowering and is well within tolerance.)
        h = jnp.where(h > 0, h, jnp.exp(h) - 1.0)

    out_ref[...] = h.astype(out_ref.dtype)


def graph_attention_forward(feat_edge, feat_edge_a, feat_node_a,
                            weight, att, adj=None, *,
                            alpha=0.1, sup=False, concat=True,
                            row_tile=256):
    """Fused GAT forward. att has shape (2*E, 1). adj only used when sup=True."""
    N, E = feat_edge.shape
    N_a, E2 = feat_edge_a.shape
    assert E == E2
    F_in = feat_node_a.shape[1]
    F_out = weight.shape[1]
    if sup:
        assert adj is not None, "sup=True requires an adjacency matrix"

    att1 = att[:E, 0].reshape(1, E)   # (1, E)
    att2 = att[E:, 0].reshape(1, E)   # (1, E)

    # Row tiling over N: bounds the live (TM, N_a) softmax working set and
    # enables input/output pipelining + megacore sharding. At the toy shapes
    # below this collapses to a single block. (For very large N_a, a
    # flash-style online softmax over an N_a grid axis would be the next step;
    # also consider pltpu.CompilerParams(vmem_limit_bytes=...) when scaling.)
    tm = N if N <= row_tile else row_tile
    grid = (pl.cdiv(N, tm),)

    def row_spec(cols):
        return pl.BlockSpec((tm, cols), lambda i: (i, 0))

    def full_spec(rows, cols):
        return pl.BlockSpec((rows, cols), lambda i: (0, 0))

    in_specs = [
        row_spec(E),              # feat_edge     (row tiled)
        full_spec(N_a, E),        # feat_edge_a   (grid invariant)
        full_spec(N_a, F_in),     # feat_node_a   (grid invariant)
        full_spec(F_in, F_out),   # weight        (grid invariant)
        full_spec(1, E),          # att1
        full_spec(1, E),          # att2
    ]
    args = [feat_edge, feat_edge_a, feat_node_a, weight, att1, att2]
    if sup:
        in_specs.append(row_spec(N_a))   # adj only DMA'd when actually used
        args.append(adj)

    kernel = functools.partial(_gat_kernel, alpha=alpha, sup=sup, concat=concat)

    return pl.pallas_call(
        kernel,
        out_shape=jax.ShapeDtypeStruct((N, F_out), jnp.float32),
        grid_spec=pltpu.PrefetchScalarGridSpec(
            num_scalar_prefetch=0,
            grid=grid,
            in_specs=in_specs,
            out_specs=row_spec(F_out),
        ),
        compiler_params=pltpu.CompilerParams(
            dimension_semantics=("parallel",)),
    )(*args)


def _xavier_normal(key, shape, gain):
    fan_in, fan_out = shape[0], shape[1]
    std = gain * jnp.sqrt(2.0 / (fan_in + fan_out))
    return std * jax.random.normal(key, shape, dtype=jnp.float32)


def _reference(feat_edge, feat_edge_a, feat_node_a, weight, att,
               adj=None, alpha=0.1, sup=False, concat=True):
    # Pure f32 JAX reference (matches the PyTorch module semantics).
    E = feat_edge.shape[1]
    wh = feat_node_a @ weight
    a1 = feat_edge @ att[:E, :]
    a2 = feat_edge_a @ att[E:, :]
    e = a1 + a2.T
    e = jnp.where(e > 0, e, alpha * e)
    if sup:
        e = jnp.where(adj > 0, e, jnp.full_like(e, -9e15))
    attention = jax.nn.softmax(e, axis=1)
    h_prime = attention @ wh
    return jax.nn.elu(h_prime) if concat else h_prime


if __name__ == "__main__":
    key = jax.random.PRNGKey(0)
    k1, k2, k3, k4, k5, k6 = jax.random.split(key, 6)

    # small, module-consistent shapes
    N, N_a = 8, 16          # edge-graph nodes / node-graph nodes
    in_features = 32
    out_features = 32
    edge_features = 16
    alpha = 0.1

    feat_edge = jax.random.normal(k1, (N, edge_features), dtype=jnp.float32)
    feat_edge_a = jax.random.normal(k2, (N_a, edge_features), dtype=jnp.float32)
    feat_node_a = jax.random.normal(k3, (N_a, in_features), dtype=jnp.float32)

    # deterministic parameter init (xavier_normal_, gain=1.414)
    weight = _xavier_normal(k4, (in_features, out_features), gain=1.414)
    att = _xavier_normal(k5, (2 * edge_features, 1), gain=1.414)

    adj = (jax.random.uniform(k6, (N, N_a)) > 0.3).astype(jnp.float32)

    # Tolerance is set for bf16 MXU operands (f32 accumulation) + approximate
    # reciprocal; the f32 reference is a few 1e-3..1e-2 away at these scales.
    ATOL = 5e-2
    RTOL = 5e-2

    # sup=False path (default forward call) — note: no adj operand is DMA'd.
    out = graph_attention_forward(feat_edge, feat_edge_a, feat_node_a,
                                  weight, att, alpha=alpha,
                                  sup=False, concat=True)
    out = jax.block_until_ready(out)
    ref = _reference(feat_edge, feat_edge_a, feat_node_a, weight, att,
                     alpha=alpha, sup=False, concat=True)
    assert out.shape == (N, out_features)
    assert jnp.allclose(out, ref, atol=ATOL, rtol=RTOL)

    # sup=True path (adj masking)
    out_sup = graph_attention_forward(feat_edge, feat_edge_a, feat_node_a,
                                      weight, att, adj=adj, alpha=alpha,
                                      sup=True, concat=True)
    out_sup = jax.block_until_ready(out_sup)
    ref_sup = _reference(feat_edge, feat_edge_a, feat_node_a, weight, att,
                         adj=adj, alpha=alpha, sup=True, concat=True)
    assert jnp.allclose(out_sup, ref_sup, atol=ATOL, rtol=RTOL)

    # concat=False path (no ELU)
    out_nc = graph_attention_forward(feat_edge, feat_edge_a, feat_node_a,
                                     weight, att, alpha=alpha,
                                     sup=False, concat=False)
    out_nc = jax.block_until_ready(out_nc)
    ref_nc = _reference(feat_edge, feat_edge_a, feat_node_a, weight, att,
                        alpha=alpha, sup=False, concat=False)
    assert jnp.allclose(out_nc, ref_nc, atol=ATOL, rtol=RTOL)

    print("KERNEL_OK")
</pallas_src>

<mosaic_0001>
module attributes {stable_mosaic.version = 11 : i64} {
  func.func @_gat_kernel(%arg0: i32, %arg1: memref<8x16xf32, #tpu.memory_space<vmem>>, %arg2: memref<16x16xf32, #tpu.memory_space<vmem>>, %arg3: memref<16x32xf32, #tpu.memory_space<vmem>>, %arg4: memref<32x32xf32, #tpu.memory_space<vmem>>, %arg5: memref<1x16xf32, #tpu.memory_space<vmem>>, %arg6: memref<1x16xf32, #tpu.memory_space<vmem>>, %arg7: memref<8x32xf32, #tpu.memory_space<vmem>>) attributes {dimension_semantics = [#tpu.dimension_semantics<parallel>], iteration_bounds = array<i64: 1>, scalar_prefetch = 0 : i64, scratch_operands = 0 : i64, tpu.core_type = #tpu.core_type<tc>, window_params = [{transform_indices = @transform_0, window_bounds = array<i64: 8, 16>}, {pipeline_mode = #tpu.pipeline_mode<synchronous>, transform_indices = @transform_1, window_bounds = array<i64: 16, 16>}, {pipeline_mode = #tpu.pipeline_mode<synchronous>, transform_indices = @transform_2, window_bounds = array<i64: 16, 32>}, {pipeline_mode = #tpu.pipeline_mode<synchronous>, transform_indices = @transform_3, window_bounds = array<i64: 32, 32>}, {pipeline_mode = #tpu.pipeline_mode<synchronous>, transform_indices = @transform_4, window_bounds = array<i64: 1, 16>}, {pipeline_mode = #tpu.pipeline_mode<synchronous>, transform_indices = @transform_5, window_bounds = array<i64: 1, 16>}, {transform_indices = @transform_6, window_bounds = array<i64: 8, 32>}]} {
    %c0 = arith.constant 0 : index
    %c0_0 = arith.constant 0 : index
    %0 = vector.load %arg3[%c0, %c0_0] : memref<16x32xf32, #tpu.memory_space<vmem>>, vector<16x32xf32>
    %1 = arith.truncf %0 : vector<16x32xf32> to vector<16x32xbf16>
    %c0_1 = arith.constant 0 : index
    %c0_2 = arith.constant 0 : index
    %2 = vector.load %arg4[%c0_1, %c0_2] : memref<32x32xf32, #tpu.memory_space<vmem>>, vector<32x32xf32>
    %3 = arith.truncf %2 : vector<32x32xf32> to vector<32x32xbf16>
    %cst = arith.constant dense<0.000000e+00> : vector<16x32xf32>
    %4 = tpu.matmul %1, %3, %cst {dimension_numbers = #tpu.dot_dimension_numbers<[1], [0], [0], [1], [0, 0, 1, 1], [], []>} : vector<16x32xbf16>, vector<32x32xbf16>, vector<16x32xf32> -> vector<16x32xf32>
    %c0_3 = arith.constant 0 : index
    %c0_4 = arith.constant 0 : index
    %5 = vector.load %arg1[%c0_3, %c0_4] : memref<8x16xf32, #tpu.memory_space<vmem>>, vector<8x16xf32>
    %c0_5 = arith.constant 0 : index
    %c0_6 = arith.constant 0 : index
    %6 = vector.load %arg5[%c0_5, %c0_6] : memref<1x16xf32, #tpu.memory_space<vmem>>, vector<1x16xf32>
    %7 = vector.broadcast %6 : vector<1x16xf32> to vector<8x16xf32>
    %8 = arith.mulf %5, %7 : vector<8x16xf32>
    %cst_7 = arith.constant dense<0.000000e+00> : vector<8xf32>
    %9 = vector.multi_reduction <add>, %8, %cst_7 [1] : vector<8x16xf32> to vector<8xf32>
    %10 = vector.shape_cast %9 : vector<8xf32> to vector<8x1xf32>
    %c0_8 = arith.constant 0 : index
    %c0_9 = arith.constant 0 : index
    %11 = vector.load %arg6[%c0_8, %c0_9] : memref<1x16xf32, #tpu.memory_space<vmem>>, vector<1x16xf32>
    %c0_10 = arith.constant 0 : index
    %c0_11 = arith.constant 0 : index
    %12 = vector.load %arg2[%c0_10, %c0_11] : memref<16x16xf32, #tpu.memory_space<vmem>>, vector<16x16xf32>
    %cst_12 = arith.constant dense<0.000000e+00> : vector<1x16xf32>
    %13 = tpu.matmul %11, %12, %cst_12 {dimension_numbers = #tpu.dot_dimension_numbers<[1], [1], [0], [0], [0, 0, 1, 0], [], []>} : vector<1x16xf32>, vector<16x16xf32>, vector<1x16xf32> -> vector<1x16xf32>
    %14 = vector.broadcast %10 : vector<8x1xf32> to vector<8x16xf32>
    %15 = vector.broadcast %13 : vector<1x16xf32> to vector<8x16xf32>
    %16 = arith.addf %14, %15 : vector<8x16xf32>
    %cst_13 = arith.constant 0.000000e+00 : f32
    %17 = vector.broadcast %cst_13 : f32 to vector<8x16xf32>
    %18 = arith.cmpf ogt, %16, %17 : vector<8x16xf32>
    %cst_14 = arith.constant 1.000000e-01 : f32
    %19 = vector.broadcast %cst_14 : f32 to vector<8x16xf32>
    %20 = arith.mulf %19, %16 : vector<8x16xf32>
    %21 = arith.select %18, %16, %20 : vector<8x16xi1>, vector<8x16xf32>
    %cst_15 = arith.constant dense<0xFF800000> : vector<8xf32>
    %22 = vector.multi_reduction <maximumf>, %21, %cst_15 [1] : vector<8x16xf32> to vector<8xf32>
    %23 = vector.shape_cast %22 : vector<8xf32> to vector<8x1xf32>
    %24 = vector.broadcast %23 : vector<8x1xf32> to vector<8x16xf32>
    %25 = arith.subf %21, %24 : vector<8x16xf32>
    %26 = math.exp %25 : vector<8x16xf32>
    %cst_16 = arith.constant dense<0.000000e+00> : vector<8xf32>
    %27 = vector.multi_reduction <add>, %26, %cst_16 [1] : vector<8x16xf32> to vector<8xf32>
    %28 = vector.shape_cast %27 : vector<8xf32> to vector<8x1xf32>
    %29 = arith.truncf %26 : vector<8x16xf32> to vector<8x16xbf16>
    %30 = arith.truncf %4 : vector<16x32xf32> to vector<16x32xbf16>
    %cst_17 = arith.constant dense<0.000000e+00> : vector<8x32xf32>
    %31 = tpu.matmul %29, %30, %cst_17 {dimension_numbers = #tpu.dot_dimension_numbers<[1], [0], [0], [1], [0, 0, 1, 1], [], []>} : vector<8x16xbf16>, vector<16x32xbf16>, vector<8x32xf32> -> vector<8x32xf32>
    %32 = tpu.reciprocal %28 {approx = true} : vector<8x1xf32> -> vector<8x1xf32>
    %33 = vector.broadcast %32 : vector<8x1xf32> to vector<8x32xf32>
    %34 = arith.mulf %31, %33 : vector<8x32xf32>
    %cst_18 = arith.constant 0.000000e+00 : f32
    %35 = vector.broadcast %cst_18 : f32 to vector<8x32xf32>
    %36 = arith.cmpf ogt, %34, %35 : vector<8x32xf32>
    %37 = math.exp %34 : vector<8x32xf32>
    %cst_19 = arith.constant 1.000000e+00 : f32
    %38 = vector.broadcast %cst_19 : f32 to vector<8x32xf32>
    %39 = arith.subf %37, %38 : vector<8x32xf32>
    %40 = arith.select %36, %34, %39 : vector<8x32xi1>, vector<8x32xf32>
    %c0_20 = arith.constant 0 : index
    %c0_21 = arith.constant 0 : index
    %41 = vector.load %arg7[%c0_20, %c0_21] : memref<8x32xf32, #tpu.memory_space<vmem>>, vector<8x32xf32>
    tpu.vector_store %arg7[%c0_20, %c0_21], %40 {strides = array<i32>} : memref<8x32xf32, #tpu.memory_space<vmem>>, vector<8x32xf32>,
    return
  }
  func.func @transform_0(%arg0: i32) -> (i32, i32) {
    %c0_i32 = arith.constant 0 : i32
    %c0_i32_0 = arith.constant 0 : i32
    return %arg0, %c0_i32 : i32, i32
  }
  func.func @transform_1(%arg0: i32) -> (i32, i32) {
    %c0_i32 = arith.constant 0 : i32
    %c0_i32_0 = arith.constant 0 : i32
    %c0_i32_1 = arith.constant 0 : i32
    return %c0_i32, %c0_i32_0 : i32, i32
  }
  func.func @transform_2(%arg0: i32) -> (i32, i32) {
    %c0_i32 = arith.constant 0 : i32
    %c0_i32_0 = arith.constant 0 : i32
    %c0_i32_1 = arith.constant 0 : i32
    return %c0_i32, %c0_i32_0 : i32, i32
  }
  func.func @transform_3(%arg0: i32) -> (i32, i32) {
    %c0_i32 = arith.constant 0 : i32
    %c0_i32_0 = arith.constant 0 : i32
    %c0_i32_1 = arith.constant 0 : i32
    return %c0_i32, %c0_i32_0 : i32, i32
  }
  func.func @transform_4(%arg0: i32) -> (i32, i32) {
    %c0_i32 = arith.constant 0 : i32
    %c0_i32_0 = arith.constant 0 : i32
    %c0_i32_1 = arith.constant 0 : i32
    return %c0_i32, %c0_i32_0 : i32, i32
  }
  func.func @transform_5(%arg0: i32) -> (i32, i32) {
    %c0_i32 = arith.constant 0 : i32
    %c0_i32_0 = arith.constant 0 : i32
    %c0_i32_1 = arith.constant 0 : i32
    return %c0_i32, %c0_i32_0 : i32, i32
  }
  func.func @transform_6(%arg0: i32) -> (i32, i32) {
    %c0_i32 = arith.constant 0 : i32
    %c0_i32_0 = arith.constant 0 : i32
    return %arg0, %c0_i32 : i32, i32
  }
}

</mosaic_0001>

<llo_original>
// kernel: tpu_custom_call.1
$region0: #{tpu_custom_call.1}
  #allocation0 [shape = 'u32[]', space=smem, size = 0x4, offset = 0x4, fixed_abs, tag = 'smem constant byte address 0x4 - core index']
  #allocation1 [shape = 'u32[72,128]{1,0:T(1,128)}', space=vmem, size = 0x9000, scoped, tag = 'internal scratch']
  %s0 = inlined_call_operand.hbm [shape: f32[8,16], index: 0, kind: input, shape index: {}]
  %s1 = inlined_call_operand.hbm [shape: f32[16,16], index: 1, kind: input, shape index: {}]
  %s2 = inlined_call_operand.hbm [shape: f32[16,32], index: 2, kind: input, shape index: {}]
  %s3 = inlined_call_operand.hbm [shape: f32[32,32], index: 3, kind: input, shape index: {}]
  %s4 = inlined_call_operand.vmem [shape: f32[1,16], index: 4, kind: input, shape index: {}]
  %s5 = inlined_call_operand.vmem [shape: f32[1,16], index: 5, kind: input, shape index: {}]
  %s6 = inlined_call_operand.hbm [shape: f32[8,32], index: 6, kind: output, shape index: {}]
  %s7 = sld [smem:[#allocation0]]
  $region50: #{tpu_custom_call.1} parent=0
    _
  %s9 = ssub.s32 1, %s7
  %s10 = scalar_select 0, %s9, %s7
  $region1: #{tpu_custom_call.1} parent=0
    #allocation2 [shape = 'u8[4096]{0}', space=vmem, size = 0x1000, scoped, tag = 'input window, operand 0, single buffered']
    #allocation3 [shape = 's32[1]{0}', space=sflag, size = 0x4, scoped, tag = 'scoped memory for tpu_custom_call.1']
    #allocation4 [shape = 's32[1]{0}', space=sflag, size = 0x4, scoped, tag = 'scoped memory for tpu_custom_call.1']
    #allocation5 [shape = 'u8[8192]{0}', space=vmem, size = 0x2000, scoped, tag = 'input window, operand 1, single buffered']
    #allocation6 [shape = 's32[1]{0}', space=sflag, size = 0x4, scoped, tag = 'scoped memory for tpu_custom_call.1']
    #allocation7 [shape = 'u8[8192]{0}', space=vmem, size = 0x2000, scoped, tag = 'input window, operand 2, single buffered']
    #allocation8 [shape = 'u8[16384]{0}', space=vmem, size = 0x4000, scoped, tag = 'input window, operand 3, single buffered']
    #allocation9 [shape = 's32[1]{0}', space=sflag, size = 0x4, scoped, tag = 'scoped memory for tpu_custom_call.1']
    #allocation10 [shape = 'u8[4096]{0}', space=vmem, size = 0x1000, scoped, tag = 'output window, operand 0, single buffered']
    %11 = vsyncpa [#allocation3], 0
    %12 = vsyncpa [#allocation6], 0
    %13 = vsyncpa [#allocation9], 0
    %14 = vsyncpa [#allocation4], 0
    // Predicated region
    $region2: #{tpu_custom_call.1} parent=1 // pred_check
      _
    $region3: #{tpu_custom_call.1} parent=1 // pred_check_branch
      %16 = sbr.rel (0) target = $region5
    $region4: #{tpu_custom_call.1} parent=1 // pred_region
      %18 = vsyncadd [#allocation3], 0
      %s20 = sshll.u32 %s0, 4
      %s21 = int_to_ptr.hbm [resolvable:$true] %s20
      %s22 = sshll.u32 [#allocation2], 4
      %s23 = int_to_ptr.vmem [resolvable:$true] %s22
      %25 = dma.hbm_to_vmem [thread:$0]  %s21, 128, %s23, [#allocation3]
    $region5: #{tpu_custom_call.1} parent=1 // pred_fallthru
      _
    // Predicated region
    $region6: #{tpu_custom_call.1} parent=1 // pred_check
      _
    $region7: #{tpu_custom_call.1} parent=1 // pred_check_branch
      %27 = sbr.rel (0) target = $region9
    $region8: #{tpu_custom_call.1} parent=1 // pred_region
      %29 = vsyncadd [#allocation6], 0
      %s30 = sshll.u32 %s1, 4
      %s31 = int_to_ptr.hbm [resolvable:$true] %s30
      %s32 = sshll.u32 [#allocation5], 4
      %s33 = int_to_ptr.vmem [resolvable:$true] %s32
      %38 = dma.hbm_to_vmem [thread:$0]  %s31, 256, %s33, [#allocation6], 128, 128, 8
    $region9: #{tpu_custom_call.1} parent=1 // pred_fallthru
      _
    // Predicated region
    $region10: #{tpu_custom_call.1} parent=1 // pred_check
      _
    $region11: #{tpu_custom_call.1} parent=1 // pred_check_branch
      %40 = sbr.rel (0) target = $region13
    $region12: #{tpu_custom_call.1} parent=1 // pred_region
      %42 = vsyncadd [#allocation6], 0
      %s43 = sshll.u32 %s2, 4
      %s44 = int_to_ptr.hbm [resolvable:$true] %s43
      %s45 = sshll.u32 [#allocation7], 4
      %s46 = int_to_ptr.vmem [resolvable:$true] %s45
      %51 = dma.hbm_to_vmem [thread:$0]  %s44, 256, %s46, [#allocation6], 128, 128, 8
    $region13: #{tpu_custom_call.1} parent=1 // pred_fallthru
      _
    // Predicated region
    $region14: #{tpu_custom_call.1} parent=1 // pred_check
      _
    $region15: #{tpu_custom_call.1} parent=1 // pred_check_branch
      %53 = sbr.rel (0) target = $region17
    $region16: #{tpu_custom_call.1} parent=1 // pred_region
      %55 = vsyncadd [#allocation9], 0
      %s56 = sshll.u32 %s3, 4
      %s57 = int_to_ptr.hbm [resolvable:$true] %s56
      %s58 = sshll.u32 [#allocation8], 4
      %s59 = int_to_ptr.vmem [resolvable:$true] %s58
      %64 = dma.hbm_to_vmem [thread:$0]  %s57, 512, %s59, [#allocation9], 128, 128, 8
    $region17: #{tpu_custom_call.1} parent=1 // pred_fallthru
      _
    // Predicated region
    $region18: #{tpu_custom_call.1} parent=1 // pred_check
      _
    $region19: #{tpu_custom_call.1} parent=1 // pred_check_branch
      %66 = sbr.rel (0) target = $region21
    $region20: #{tpu_custom_call.1} parent=1 // pred_region
      _
    $region21: #{tpu_custom_call.1} parent=1 // pred_fallthru
      _
    // Predicated region
    $region22: #{tpu_custom_call.1} parent=1 // pred_check
      _
    $region23: #{tpu_custom_call.1} parent=1 // pred_check_branch
      %68 = sbr.rel (0) target = $region25
    $region24: #{tpu_custom_call.1} parent=1 // pred_region
      _
    $region25: #{tpu_custom_call.1} parent=1 // pred_fallthru
      _
    // Predicated region
    $region26: #{tpu_custom_call.1} parent=1 // pred_check
      _
    $region27: #{tpu_custom_call.1} parent=1 // pred_check_branch
      %70 = sbr.rel (0) target = $region29
    $region28: #{tpu_custom_call.1} parent=1 // pred_region
      %72 = dma.done [#allocation3], 128
    $region29: #{tpu_custom_call.1} parent=1 // pred_fallthru
      _
    // Predicated region
    $region30: #{tpu_custom_call.1} parent=1 // pred_check
      _
    $region31: #{tpu_custom_call.1} parent=1 // pred_check_branch
      %74 = sbr.rel (0) target = $region33
    $region32: #{tpu_custom_call.1} parent=1 // pred_region
      %76 = dma.done [#allocation6], 256
    $region33: #{tpu_custom_call.1} parent=1 // pred_fallthru
      _
    // Predicated region
    $region34: #{tpu_custom_call.1} parent=1 // pred_check
      _
    $region35: #{tpu_custom_call.1} parent=1 // pred_check_branch
      %78 = sbr.rel (0) target = $region37
    $region36: #{tpu_custom_call.1} parent=1 // pred_region
      %80 = dma.done [#allocation6], 256
    $region37: #{tpu_custom_call.1} parent=1 // pred_fallthru
      _
    // Predicated region
    $region38: #{tpu_custom_call.1} parent=1 // pred_check
      _
    $region39: #{tpu_custom_call.1} parent=1 // pred_check_branch
      %82 = sbr.rel (0) target = $region41
    $region40: #{tpu_custom_call.1} parent=1 // pred_region
      %84 = dma.done [#allocation9], 512
    $region41: #{tpu_custom_call.1} parent=1 // pred_fallthru
      _
    %v86 = vld [vmem:[#allocation7] sm:$0xff]
    %v87 = vld [vmem:[#allocation7 + $0x8] sm:$0xff]
    %v88 = vpack.c.bf16 %v87, %v86
    %v89 = vld [vmem:[#allocation8] sm:$0xff]
    %v90 = vld [vmem:[#allocation8 + $0x8] sm:$0xff]
    %v91 = vld [vmem:[#allocation8 + $0x10] sm:$0xff]
    %v92 = vld [vmem:[#allocation8 + $0x18] sm:$0xff]
    %v93 = vpack.c.bf16 %v90, %v89
    %v94 = vpack.c.bf16 %v92, %v91
    %vm95 = vcmask 261120
    %v97 = vsel %vm95, %v88, 0
    %99 = vmatpush.bf16.msra.mxu0 0
    %100 = vmatpush.bf16.msra.mxu0 0
    %101 = vmatpush.bf16.msra.mxu0 0
    %102 = vmatpush.bf16.msra.mxu0 0
    %103 = vmatpush.bf16.msra.mxu0 0
    %104 = vmatpush.bf16.msra.mxu0 0
    %105 = vmatpush.bf16.msra.mxu0 %v94
    %106 = vmatpush.bf16.msra.mxu0 %v93
    %107 = vmatmul.bf16.gmra.mxu0 %v97
    %v108 = vpop.f32.mrf.mxu0
    %v109 = vadd.f32 0.0, %v108
    %v110 = vpop.f32.mrf.mxu0
    %v111 = vadd.f32 0.0, %v110
    %112 = vdwg.mxu0
    %v113 = vld [vmem:[#allocation2] sm:$0xff]
    %v114 = vld [vmem:[%s4] sm:$0x1]
    %v116 = vperm.slane %v114, 0
    %v118 = vmul.f32 %v113, %v116
    %vm119 = vcmask 130048
    %v120 = vsel %vm119, %v118, 0.0
    %121 = vadd.xlane.f32.xlu0 %v120
    %v122 = vpop.xlane.xlu0 %121
    %v123 = vld [vmem:[%s5] sm:$0x1]
    %v124 = vld [vmem:[#allocation5] sm:$0xff]
    %v125 = vld [vmem:[#allocation5 + $0x8] sm:$0xff]
    %v127 = vsel %vm119, %v123, 0
    %v130 = vsel %vm119, %v124, 0
    %v133 = vsel %vm119, %v125, 0
    %135 = vmatpush.xpose.msra.mxu0 0.0
    %136 = vmatpush.xpose.msra.mxu0 0.0
    %137 = vmatpush.xpose.msra.mxu0 0.0
    %138 = vmatpush.xpose.msra.mxu0 0.0
    %139 = vmatpush.xpose.msra.mxu0 0.0
    %140 = vmatpush.xpose.msra.mxu0 0.0
    %141 = vmatpush.xpose.msra.mxu0 0.0
    %142 = vmatpush.xpose.msra.mxu0 0.0
    %143 = vmatpush.xpose.msra.mxu0 0.0
    %144 = vmatpush.xpose.msra.mxu0 0.0
    %145 = vmatpush.xpose.msra.mxu0 0.0
    %146 = vmatpush.xpose.msra.mxu0 0.0
    %147 = vmatpush.xpose.msra.mxu0 0.0
    %148 = vmatpush.xpose.msra.mxu0 0.0
    %149 = vmatpush.xpose.msra.mxu0 %v133
    %150 = vmatpush.xpose.msra.mxu0 %v130
    %151 = vmatmul.f32.gmra.mxu0 %v127
    %v152 = vpop.f32.mrf.mxu0
    %v153 = vadd.f32 0.0, %v152
    %154 = vdwg.mxu0
    %v155 = vperm.slane %v153, 0
    %v156 = vadd.f32 %v122, %v155
    %vm157 = vcmp.gt.f32.partialorder %v156, 0.0
    %v158 = vmul.f32 %v156, 0.1
    %v159 = vsel %vm157, %v156, %v158
    %v160 = vsel %vm119, %v159, -inf
    %161 = vmax.xlane.f32.xlu0 %v160
    %v162 = vpop.xlane.xlu0 %161
    %v163 = vsub.f32 %v159, %v162
    %v164 = vmul.f32 %v163, 1.442695
    %v165 = vpow.pop %v164
    %v166 = vsel %vm119, %v165, 0.0
    %167 = vadd.xlane.f32.xlu0 %v166
    %v168 = vpop.xlane.xlu0 %167
    %v169 = vpack.c.bf16 %v165, %v165
    %v170 = vpack.c.bf16 %v111, %v109
    %v172 = vsel %vm119, %v169, 0
    %174 = vmatpush.bf16.msra.mxu0 0
    %175 = vmatpush.bf16.msra.mxu0 0
    %176 = vmatpush.bf16.msra.mxu0 0
    %177 = vmatpush.bf16.msra.mxu0 0
    %178 = vmatpush.bf16.msra.mxu0 0
    %179 = vmatpush.bf16.msra.mxu0 0
    %180 = vmatpush.bf16.msra.mxu0 0
    %181 = vmatpush.bf16.msra.mxu0 %v170
    %182 = vmatmul.bf16.gmra.mxu0 %v172
    %v183 = vpop.f32.mrf.mxu0
    %v184 = vadd.f32 0.0, %v183
    %v185 = vpop.f32.mrf.mxu0
    %186 = vdwg.mxu0
    %v187 = vrcp.pop %v168
    %v188 = vmul.f32 %v184, %v187
    %vm189 = vcmp.gt.f32.partialorder %v188, 0.0
    %v190 = vmul.f32 %v188, 1.442695
    %v191 = vpow.pop %v190
    %v192 = vsub.f32 %v191, 1.0
    %v193 = vsel %vm189, %v188, %v192
    %194 = vst.msk [vmem:[#allocation10] sm:$0xff] %vm95, %v193
    // Predicated region
    $region42: #{tpu_custom_call.1} parent=1 // pred_check
      _
    $region43: #{tpu_custom_call.1} parent=1 // pred_check_branch
      %196 = sbr.rel (0) target = $region45
    $region44: #{tpu_custom_call.1} parent=1 // pred_region
      %198 = vsyncadd [#allocation4], 0
      %s200 = sshll.u32 [#allocation10], 4
      %s201 = int_to_ptr.vmem [resolvable:$true] %s200
      %s202 = sshll.u32 %s6, 4
      %s203 = int_to_ptr.hbm [resolvable:$true] %s202
      %205 = dma.vmem_to_hbm [thread:$0]  %s201, 128, %s203, [#allocation4]
    $region45: #{tpu_custom_call.1} parent=1 // pred_fallthru
      _
    // Predicated region
    $region46: #{tpu_custom_call.1} parent=1 // pred_check
      _
    $region47: #{tpu_custom_call.1} parent=1 // pred_check_branch
      %207 = sbr.rel (0) target = $region49
    $region48: #{tpu_custom_call.1} parent=1 // pred_region
      %209 = dma.done [#allocation4], 128
    $region49: #{tpu_custom_call.1} parent=1 // pred_fallthru
      _
    %210 = vsyncpa [#allocation3], 1
    %211 = vsyncpa [#allocation6], 1
    %212 = vsyncpa [#allocation9], 1
    %213 = vsyncpa [#allocation4], 1

</llo_original>
